<compile_context>
chip_gen: v7x
topology: tpu7x:2x2x1
jax: 0.10.0
libtpu: 0.0.40
codegen_flags: <defaults>
</compile_context>

<pallas_src>
import functools

import jax
import jax.numpy as jnp
from jax.experimental import pallas as pl
from jax.experimental.pallas import tpu as pltpu

NEG_SLOPE = 0.01  # nn.LeakyReLU default
_LANE = 128       # lane width: feature dims padded to this
_SUBLANE = 16     # batch-tile multiple (covers f32 sublane=8 and bf16 packing=16)


def _round_up(n, m):
    return (n + m - 1) // m * m


def _leaky_relu(x):
    return jnp.where(x >= 0, x, NEG_SLOPE * x)


def ffnn_kernel(x_ref, w1_ref, b1_ref, w2_ref, b2_ref, w3_ref, b3_ref, o_ref):
    cd = w1_ref.dtype  # MXU input dtype (bf16 or f32); accumulation is always f32
    # Layer 1: Linear(Din -> H) + LeakyReLU (dropout = identity in eval mode)
    h = jnp.dot(x_ref[...], w1_ref[...], preferred_element_type=jnp.float32)
    h = _leaky_relu(h + b1_ref[...])                      # f32 epilogue on the VPU
    # Layer 2: Linear(H -> H) + LeakyReLU
    h = jnp.dot(h.astype(cd), w2_ref[...], preferred_element_type=jnp.float32)
    h = _leaky_relu(h + b2_ref[...])
    # Layer 3: Linear(H -> Dout)
    out = jnp.dot(h.astype(cd), w3_ref[...], preferred_element_type=jnp.float32)
    out = out + b3_ref[...]
    o_ref[...] = out.astype(o_ref.dtype)


@functools.partial(jax.jit, static_argnames=("tb", "compute_dtype"))
def ffnn_forward(x, w1, b1, w2, b2, w3, b3, *, tb=256, compute_dtype=jnp.bfloat16):
    B, Din = x.shape
    H = w1.shape[1]
    Dout = w3.shape[1]
    out_dtype = x.dtype
    cd = jnp.dtype(compute_dtype)

    # Lane-dense feature dims (multiples of 128) -> full-width vst, no masked stores.
    Din_p = _round_up(Din, _LANE)
    H_p = _round_up(H, _LANE)
    Dout_p = _round_up(Dout, _LANE)

    # Large batch tile to keep the MXU fed and amortize per-grid-step overhead,
    # clamped so we never make the tile bigger than the (padded) batch. The batch
    # is zero-padded to a multiple of the tile, so no partial / OOB blocks exist.
    tb_eff = min(_round_up(tb, _SUBLANE), _round_up(B, _SUBLANE))
    B_p = _round_up(B, tb_eff)
    grid = (B_p // tb_eff,)

    def pad2(a, rows, cols, dtype):
        a = a.astype(dtype)
        return jnp.pad(a, ((0, rows - a.shape[0]), (0, cols - a.shape[1])))

    # Weights/activations in compute dtype (bf16 by default); biases kept f32.
    x_p = pad2(x, B_p, Din_p, cd)
    w1_p = pad2(w1, Din_p, H_p, cd)
    w2_p = pad2(w2, H_p, H_p, cd)
    w3_p = pad2(w3, H_p, Dout_p, cd)
    b1_p = pad2(b1, 1, H_p, jnp.float32)
    b2_p = pad2(b2, 1, H_p, jnp.float32)
    b3_p = pad2(b3, 1, Dout_p, jnp.float32)

    # Cost estimate for XLA's scheduler.
    flops = 2 * B_p * (Din_p * H_p + H_p * H_p + H_p * Dout_p)
    bytes_accessed = (
        B_p * Din_p * cd.itemsize
        + (Din_p * H_p + H_p * H_p + H_p * Dout_p) * cd.itemsize
        + (2 * H_p + Dout_p) * 4
        + B_p * Dout_p * jnp.dtype(out_dtype).itemsize
    )

    # VMEM budget: double-buffered inputs + output tile + f32 intermediates,
    # plus headroom; capped at 64 MiB so it is valid on v5e/v6e/v7x alike.
    w_bytes = (Din_p * H_p + H_p * H_p + H_p * Dout_p) * cd.itemsize
    b_bytes = (2 * H_p + Dout_p) * 4
    tile_bytes = tb_eff * (Din_p * cd.itemsize + Dout_p * 4 + 2 * H_p * 4)
    vmem_bytes = min(2 * (w_bytes + b_bytes + tile_bytes) + (8 << 20), 64 << 20)

    out_p = pl.pallas_call(
        ffnn_kernel,
        out_shape=jax.ShapeDtypeStruct((B_p, Dout_p), out_dtype),
        grid_spec=pltpu.PrefetchScalarGridSpec(
            num_scalar_prefetch=0,
            grid=grid,
            in_specs=[
                pl.BlockSpec((tb_eff, Din_p), lambda i: (i, 0)),  # x tile over batch
                # Grid-invariant weights/biases stay resident in VMEM.
                pl.BlockSpec((Din_p, H_p), lambda i: (0, 0)),     # W1
                pl.BlockSpec((1, H_p), lambda i: (0, 0)),         # b1 (f32)
                pl.BlockSpec((H_p, H_p), lambda i: (0, 0)),       # W2
                pl.BlockSpec((1, H_p), lambda i: (0, 0)),         # b2 (f32)
                pl.BlockSpec((H_p, Dout_p), lambda i: (0, 0)),    # W3
                pl.BlockSpec((1, Dout_p), lambda i: (0, 0)),      # b3 (f32)
            ],
            out_specs=pl.BlockSpec((tb_eff, Dout_p), lambda i: (i, 0)),
        ),
        compiler_params=pltpu.CompilerParams(
            dimension_semantics=("parallel",),
            vmem_limit_bytes=int(vmem_bytes),
        ),
        cost_estimate=pl.CostEstimate(
            flops=int(flops), transcendentals=0, bytes_accessed=int(bytes_accessed)
        ),
    )(x_p, w1_p, b1_p, w2_p, b2_p, w3_p, b3_p)

    return out_p[:B, :Dout]


def ffnn_ref(x, w1, b1, w2, b2, w3, b3, *, compute_dtype=jnp.float32):
    """Pure-JAX reference mirroring the kernel's mixed-precision recipe."""
    cd = compute_dtype
    h = jnp.dot(x.astype(cd), w1.astype(cd), preferred_element_type=jnp.float32)
    h = _leaky_relu(h + b1)
    h = jnp.dot(h.astype(cd), w2.astype(cd), preferred_element_type=jnp.float32)
    h = _leaky_relu(h + b2)
    out = jnp.dot(h.astype(cd), w3.astype(cd), preferred_element_type=jnp.float32)
    return out + b3


def ffnn_apply(x, params, *, tb=256, compute_dtype=jnp.bfloat16):
    """Dispatcher: tiny problems go to XLA's fused path, bigger ones to Pallas."""
    B = x.shape[0]
    H = params[0].shape[1]
    if B * H < 64 * 1024:
        return ffnn_ref(x, *params, compute_dtype=jnp.float32)
    return ffnn_forward(x, *params, tb=tb, compute_dtype=compute_dtype)


def glorot_uniform(key, fan_in, fan_out, dtype=jnp.float32):
    # Matches torch_geometric's glorot(): U(-a, a), a = sqrt(6 / (fan_in + fan_out))
    a = jnp.sqrt(6.0 / (fan_in + fan_out)).astype(dtype)
    return jax.random.uniform(key, (fan_in, fan_out), dtype, minval=-a, maxval=a)


def init_params(key, input_dim, hidden_dim, output_dim):
    k = jax.random.split(key, 6)
    w1 = glorot_uniform(k[0], input_dim, hidden_dim)
    b1 = jax.random.uniform(k[1], (1, hidden_dim), jnp.float32, -0.1, 0.1)
    w2 = glorot_uniform(k[2], hidden_dim, hidden_dim)
    b2 = jax.random.uniform(k[3], (1, hidden_dim), jnp.float32, -0.1, 0.1)
    w3 = glorot_uniform(k[4], hidden_dim, output_dim)
    b3 = jax.random.uniform(k[5], (1, output_dim), jnp.float32, -0.1, 0.1)
    return w1, b1, w2, b2, w3, b3


if __name__ == "__main__":
    # Small shapes consistent with FFNN(n_layers=3); batch deliberately not a
    # multiple of the tile and Dout=125 not a multiple of 128 to exercise padding.
    batch, input_dim, hidden_dim, output_dim = 100, 256, 128, 125

    key = jax.random.PRNGKey(0)
    kx, kp = jax.random.split(key)
    x = jax.random.normal(kx, (batch, input_dim), jnp.float32)
    params = init_params(kp, input_dim, hidden_dim, output_dim)

    # f32 compute path: tight check against the matching pure-JAX reference.
    out_f32 = jax.block_until_ready(
        ffnn_forward(x, *params, tb=256, compute_dtype=jnp.float32))
    ref_f32 = ffnn_ref(x, *params, compute_dtype=jnp.float32)
    assert out_f32.shape == (batch, output_dim)
    assert jnp.allclose(out_f32, ref_f32, atol=1e-4, rtol=1e-4), "f32 mismatch"

    # Default bf16-storage / f32-accumulate path: check against a bf16 reference.
    out_bf16 = jax.block_until_ready(
        ffnn_forward(x, *params, tb=256, compute_dtype=jnp.bfloat16))
    ref_bf16 = ffnn_ref(x, *params, compute_dtype=jnp.bfloat16)
    assert out_bf16.shape == (batch, output_dim)
    assert jnp.allclose(out_bf16, ref_bf16, atol=1e-2, rtol=1e-2), "bf16 mismatch"

    print("KERNEL_OK")
</pallas_src>

<mosaic_0001>
module attributes {stable_mosaic.version = 11 : i64} {
  func.func @ffnn_kernel(%arg0: i32, %arg1: memref<112x256xf32, #tpu.memory_space<vmem>>, %arg2: memref<256x128xf32, #tpu.memory_space<vmem>>, %arg3: memref<1x128xf32, #tpu.memory_space<vmem>>, %arg4: memref<128x128xf32, #tpu.memory_space<vmem>>, %arg5: memref<1x128xf32, #tpu.memory_space<vmem>>, %arg6: memref<128x128xf32, #tpu.memory_space<vmem>>, %arg7: memref<1x128xf32, #tpu.memory_space<vmem>>, %arg8: memref<112x128xf32, #tpu.memory_space<vmem>>) attributes {dimension_semantics = [#tpu.dimension_semantics<parallel>], iteration_bounds = array<i64: 1>, scalar_prefetch = 0 : i64, scratch_operands = 0 : i64, tpu.core_type = #tpu.core_type<tc>, window_params = [{transform_indices = @transform_0, window_bounds = array<i64: 112, 256>}, {pipeline_mode = #tpu.pipeline_mode<synchronous>, transform_indices = @transform_1, window_bounds = array<i64: 256, 128>}, {pipeline_mode = #tpu.pipeline_mode<synchronous>, transform_indices = @transform_2, window_bounds = array<i64: 1, 128>}, {pipeline_mode = #tpu.pipeline_mode<synchronous>, transform_indices = @transform_3, window_bounds = array<i64: 128, 128>}, {pipeline_mode = #tpu.pipeline_mode<synchronous>, transform_indices = @transform_4, window_bounds = array<i64: 1, 128>}, {pipeline_mode = #tpu.pipeline_mode<synchronous>, transform_indices = @transform_5, window_bounds = array<i64: 128, 128>}, {pipeline_mode = #tpu.pipeline_mode<synchronous>, transform_indices = @transform_6, window_bounds = array<i64: 1, 128>}, {transform_indices = @transform_7, window_bounds = array<i64: 112, 128>}]} {
    %c0 = arith.constant 0 : index
    %c0_0 = arith.constant 0 : index
    %0 = vector.load %arg1[%c0, %c0_0] : memref<112x256xf32, #tpu.memory_space<vmem>>, vector<112x256xf32>
    %c0_1 = arith.constant 0 : index
    %c0_2 = arith.constant 0 : index
    %1 = vector.load %arg2[%c0_1, %c0_2] : memref<256x128xf32, #tpu.memory_space<vmem>>, vector<256x128xf32>
    %cst = arith.constant dense<0.000000e+00> : vector<112x128xf32>
    %2 = tpu.matmul %0, %1, %cst {dimension_numbers = #tpu.dot_dimension_numbers<[1], [0], [0], [1], [0, 0, 1, 1], [], []>} : vector<112x256xf32>, vector<256x128xf32>, vector<112x128xf32> -> vector<112x128xf32>
    %c0_3 = arith.constant 0 : index
    %c0_4 = arith.constant 0 : index
    %3 = vector.load %arg3[%c0_3, %c0_4] : memref<1x128xf32, #tpu.memory_space<vmem>>, vector<1x128xf32>
    %4 = vector.broadcast %3 : vector<1x128xf32> to vector<112x128xf32>
    %5 = arith.addf %2, %4 : vector<112x128xf32>
    %cst_5 = arith.constant 0.000000e+00 : f32
    %6 = vector.broadcast %cst_5 : f32 to vector<112x128xf32>
    %7 = arith.cmpf oge, %5, %6 : vector<112x128xf32>
    %cst_6 = arith.constant 0.00999999977 : f32
    %8 = vector.broadcast %cst_6 : f32 to vector<112x128xf32>
    %9 = arith.mulf %8, %5 : vector<112x128xf32>
    %10 = arith.select %7, %5, %9 : vector<112x128xi1>, vector<112x128xf32>
    %c0_7 = arith.constant 0 : index
    %c0_8 = arith.constant 0 : index
    %11 = vector.load %arg4[%c0_7, %c0_8] : memref<128x128xf32, #tpu.memory_space<vmem>>, vector<128x128xf32>
    %cst_9 = arith.constant dense<0.000000e+00> : vector<112x128xf32>
    %12 = tpu.matmul %10, %11, %cst_9 {dimension_numbers = #tpu.dot_dimension_numbers<[1], [0], [0], [1], [0, 0, 1, 1], [], []>} : vector<112x128xf32>, vector<128x128xf32>, vector<112x128xf32> -> vector<112x128xf32>
    %c0_10 = arith.constant 0 : index
    %c0_11 = arith.constant 0 : index
    %13 = vector.load %arg5[%c0_10, %c0_11] : memref<1x128xf32, #tpu.memory_space<vmem>>, vector<1x128xf32>
    %14 = vector.broadcast %13 : vector<1x128xf32> to vector<112x128xf32>
    %15 = arith.addf %12, %14 : vector<112x128xf32>
    %cst_12 = arith.constant 0.000000e+00 : f32
    %16 = vector.broadcast %cst_12 : f32 to vector<112x128xf32>
    %17 = arith.cmpf oge, %15, %16 : vector<112x128xf32>
    %cst_13 = arith.constant 0.00999999977 : f32
    %18 = vector.broadcast %cst_13 : f32 to vector<112x128xf32>
    %19 = arith.mulf %18, %15 : vector<112x128xf32>
    %20 = arith.select %17, %15, %19 : vector<112x128xi1>, vector<112x128xf32>
    %c0_14 = arith.constant 0 : index
    %c0_15 = arith.constant 0 : index
    %21 = vector.load %arg6[%c0_14, %c0_15] : memref<128x128xf32, #tpu.memory_space<vmem>>, vector<128x128xf32>
    %cst_16 = arith.constant dense<0.000000e+00> : vector<112x128xf32>
    %22 = tpu.matmul %20, %21, %cst_16 {dimension_numbers = #tpu.dot_dimension_numbers<[1], [0], [0], [1], [0, 0, 1, 1], [], []>} : vector<112x128xf32>, vector<128x128xf32>, vector<112x128xf32> -> vector<112x128xf32>
    %c0_17 = arith.constant 0 : index
    %c0_18 = arith.constant 0 : index
    %23 = vector.load %arg7[%c0_17, %c0_18] : memref<1x128xf32, #tpu.memory_space<vmem>>, vector<1x128xf32>
    %24 = vector.broadcast %23 : vector<1x128xf32> to vector<112x128xf32>
    %25 = arith.addf %22, %24 : vector<112x128xf32>
    %c0_19 = arith.constant 0 : index
    %c0_20 = arith.constant 0 : index
    %26 = vector.load %arg8[%c0_19, %c0_20] : memref<112x128xf32, #tpu.memory_space<vmem>>, vector<112x128xf32>
    tpu.vector_store %arg8[%c0_19, %c0_20], %25 {strides = array<i32>} : memref<112x128xf32, #tpu.memory_space<vmem>>, vector<112x128xf32>,
    return
  }
  func.func @transform_0(%arg0: i32) -> (i32, i32) {
    %c0_i32 = arith.constant 0 : i32
    %c0_i32_0 = arith.constant 0 : i32
    return %arg0, %c0_i32 : i32, i32
  }
  func.func @transform_1(%arg0: i32) -> (i32, i32) {
    %c0_i32 = arith.constant 0 : i32
    %c0_i32_0 = arith.constant 0 : i32
    %c0_i32_1 = arith.constant 0 : i32
    return %c0_i32, %c0_i32_0 : i32, i32
  }
  func.func @transform_2(%arg0: i32) -> (i32, i32) {
    %c0_i32 = arith.constant 0 : i32
    %c0_i32_0 = arith.constant 0 : i32
    %c0_i32_1 = arith.constant 0 : i32
    return %c0_i32, %c0_i32_0 : i32, i32
  }
  func.func @transform_3(%arg0: i32) -> (i32, i32) {
    %c0_i32 = arith.constant 0 : i32
    %c0_i32_0 = arith.constant 0 : i32
    %c0_i32_1 = arith.constant 0 : i32
    return %c0_i32, %c0_i32_0 : i32, i32
  }
  func.func @transform_4(%arg0: i32) -> (i32, i32) {
    %c0_i32 = arith.constant 0 : i32
    %c0_i32_0 = arith.constant 0 : i32
    %c0_i32_1 = arith.constant 0 : i32
    return %c0_i32, %c0_i32_0 : i32, i32
  }
  func.func @transform_5(%arg0: i32) -> (i32, i32) {
    %c0_i32 = arith.constant 0 : i32
    %c0_i32_0 = arith.constant 0 : i32
    %c0_i32_1 = arith.constant 0 : i32
    return %c0_i32, %c0_i32_0 : i32, i32
  }
  func.func @transform_6(%arg0: i32) -> (i32, i32) {
    %c0_i32 = arith.constant 0 : i32
    %c0_i32_0 = arith.constant 0 : i32
    %c0_i32_1 = arith.constant 0 : i32
    return %c0_i32, %c0_i32_0 : i32, i32
  }
  func.func @transform_7(%arg0: i32) -> (i32, i32) {
    %c0_i32 = arith.constant 0 : i32
    %c0_i32_0 = arith.constant 0 : i32
    return %arg0, %c0_i32 : i32, i32
  }
}

</mosaic_0001>

<llo_original>
// kernel: ffnn_forward.1
$region0: #{ffnn_forward.1}
  #allocation0 [shape = 'u32[]', space=smem, size = 0x4, offset = 0x4, fixed_abs, tag = 'smem constant byte address 0x4 - core index']
  #allocation1 [shape = 'u32[144,128]{1,0:T(1,128)}', space=vmem, size = 0x12000, scoped, tag = 'internal scratch']
  %s0 = inlined_call_operand.vmem [shape: f32[112,256], index: 0, kind: input, shape index: {}]
  %s1 = inlined_call_operand.vmem [shape: f32[256,128], index: 1, kind: input, shape index: {}]
  %s2 = inlined_call_operand.vmem [shape: f32[1,128], index: 2, kind: input, shape index: {}]
  %s3 = inlined_call_operand.vmem [shape: f32[128,128], index: 3, kind: input, shape index: {}]
  %s4 = inlined_call_operand.vmem [shape: f32[1,128], index: 4, kind: input, shape index: {}]
  %s5 = inlined_call_operand.vmem [shape: f32[128,128], index: 5, kind: input, shape index: {}]
  %s6 = inlined_call_operand.vmem [shape: f32[1,128], index: 6, kind: input, shape index: {}]
  %s7 = inlined_call_operand.vmem [shape: f32[112,128], index: 7, kind: output, shape index: {}]
  %s8 = sld [smem:[#allocation0]]
  $region38: #{ffnn_forward.1} parent=0
    _
  %s10 = ssub.s32 1, %s8
  %s11 = scalar_select 0, %s10, %s8
  // Predicated region
  $region2: #{ffnn_forward.1} parent=0 // pred_check
    _
  $region3: #{ffnn_forward.1} parent=0 // pred_check_branch
    %13 = sbr.rel (0) target = $region5
  $region4: #{ffnn_forward.1} parent=0 // pred_region
    _
  $region5: #{ffnn_forward.1} parent=0 // pred_fallthru
    _
  // Predicated region
  $region6: #{ffnn_forward.1} parent=0 // pred_check
    _
  $region7: #{ffnn_forward.1} parent=0 // pred_check_branch
    %15 = sbr.rel (0) target = $region9
  $region8: #{ffnn_forward.1} parent=0 // pred_region
    _
  $region9: #{ffnn_forward.1} parent=0 // pred_fallthru
    _
  // Predicated region
  $region10: #{ffnn_forward.1} parent=0 // pred_check
    _
  $region11: #{ffnn_forward.1} parent=0 // pred_check_branch
    %17 = sbr.rel (0) target = $region13
  $region12: #{ffnn_forward.1} parent=0 // pred_region
    _
  $region13: #{ffnn_forward.1} parent=0 // pred_fallthru
    _
  // Predicated region
  $region14: #{ffnn_forward.1} parent=0 // pred_check
    _
  $region15: #{ffnn_forward.1} parent=0 // pred_check_branch
    %19 = sbr.rel (0) target = $region17
  $region16: #{ffnn_forward.1} parent=0 // pred_region
    _
  $region17: #{ffnn_forward.1} parent=0 // pred_fallthru
    _
  // Predicated region
  $region18: #{ffnn_forward.1} parent=0 // pred_check
    _
  $region19: #{ffnn_forward.1} parent=0 // pred_check_branch
    %21 = sbr.rel (0) target = $region21
  $region20: #{ffnn_forward.1} parent=0 // pred_region
    _
  $region21: #{ffnn_forward.1} parent=0 // pred_fallthru
    _
  // Predicated region
  $region22: #{ffnn_forward.1} parent=0 // pred_check
    _
  $region23: #{ffnn_forward.1} parent=0 // pred_check_branch
    %23 = sbr.rel (0) target = $region25
  $region24: #{ffnn_forward.1} parent=0 // pred_region
    _
  $region25: #{ffnn_forward.1} parent=0 // pred_fallthru
    _
  // Predicated region
  $region26: #{ffnn_forward.1} parent=0 // pred_check
    _
  $region27: #{ffnn_forward.1} parent=0 // pred_check_branch
    %25 = sbr.rel (0) target = $region29
  $region28: #{ffnn_forward.1} parent=0 // pred_region
    _
  $region29: #{ffnn_forward.1} parent=0 // pred_fallthru
    _
  %v26 = vld [vmem:[%s0] sm:$0xff]
  %v27 = vld [vmem:[%s0 + $0x8] sm:$0xff]
  %v28 = vld [vmem:[%s0 + $0x10] sm:$0xff]
  %v29 = vld [vmem:[%s0 + $0x18] sm:$0xff]
  %v30 = vld [vmem:[%s0 + $0x20] sm:$0xff]
  %v31 = vld [vmem:[%s0 + $0x28] sm:$0xff]
  %v32 = vld [vmem:[%s0 + $0x30] sm:$0xff]
  %v33 = vld [vmem:[%s0 + $0x38] sm:$0xff]
  %v34 = vld [vmem:[%s0 + $0x40] sm:$0xff]
  %v35 = vld [vmem:[%s0 + $0x48] sm:$0xff]
  %v36 = vld [vmem:[%s0 + $0x50] sm:$0xff]
  %v37 = vld [vmem:[%s0 + $0x58] sm:$0xff]
  %v38 = vld [vmem:[%s0 + $0x60] sm:$0xff]
  %v39 = vld [vmem:[%s0 + $0x68] sm:$0xff]
  %v40 = vld [vmem:[%s0 + $0x70] sm:$0xff]
  %v41 = vld [vmem:[%s0 + $0x78] sm:$0xff]
  %v42 = vld [vmem:[%s0 + $0x80] sm:$0xff]
  %v43 = vld [vmem:[%s0 + $0x88] sm:$0xff]
  %v44 = vld [vmem:[%s0 + $0x90] sm:$0xff]
  %v45 = vld [vmem:[%s0 + $0x98] sm:$0xff]
  %v46 = vld [vmem:[%s0 + $0xa0] sm:$0xff]
  %v47 = vld [vmem:[%s0 + $0xa8] sm:$0xff]
  %v48 = vld [vmem:[%s0 + $0xb0] sm:$0xff]
  %v49 = vld [vmem:[%s0 + $0xb8] sm:$0xff]
  %v50 = vld [vmem:[%s0 + $0xc0] sm:$0xff]
  %v51 = vld [vmem:[%s0 + $0xc8] sm:$0xff]
  %v52 = vld [vmem:[%s0 + $0xd0] sm:$0xff]
  %v53 = vld [vmem:[%s0 + $0xd8] sm:$0xff]
  %v54 = vld [vmem:[%s1] sm:$0xff]
  %v55 = vld [vmem:[%s1 + $0x8] sm:$0xff]
  %v56 = vld [vmem:[%s1 + $0x10] sm:$0xff]
  %v57 = vld [vmem:[%s1 + $0x18] sm:$0xff]
  %v58 = vld [vmem:[%s1 + $0x20] sm:$0xff]
  %v59 = vld [vmem:[%s1 + $0x28] sm:$0xff]
  %v60 = vld [vmem:[%s1 + $0x30] sm:$0xff]
  %v61 = vld [vmem:[%s1 + $0x38] sm:$0xff]
  %v62 = vld [vmem:[%s1 + $0x40] sm:$0xff]
  %v63 = vld [vmem:[%s1 + $0x48] sm:$0xff]
  %v64 = vld [vmem:[%s1 + $0x50] sm:$0xff]
  %v65 = vld [vmem:[%s1 + $0x58] sm:$0xff]
  %v66 = vld [vmem:[%s1 + $0x60] sm:$0xff]
  %v67 = vld [vmem:[%s1 + $0x68] sm:$0xff]
  %v68 = vld [vmem:[%s1 + $0x70] sm:$0xff]
  %v69 = vld [vmem:[%s1 + $0x78] sm:$0xff]
  %v70 = vld [vmem:[%s1 + $0x80] sm:$0xff]
  %v71 = vld [vmem:[%s1 + $0x88] sm:$0xff]
  %v72 = vld [vmem:[%s1 + $0x90] sm:$0xff]
  %v73 = vld [vmem:[%s1 + $0x98] sm:$0xff]
  %v74 = vld [vmem:[%s1 + $0xa0] sm:$0xff]
  %v75 = vld [vmem:[%s1 + $0xa8] sm:$0xff]
  %v76 = vld [vmem:[%s1 + $0xb0] sm:$0xff]
  %v77 = vld [vmem:[%s1 + $0xb8] sm:$0xff]
  %v78 = vld [vmem:[%s1 + $0xc0] sm:$0xff]
  %v79 = vld [vmem:[%s1 + $0xc8] sm:$0xff]
  %v80 = vld [vmem:[%s1 + $0xd0] sm:$0xff]
  %v81 = vld [vmem:[%s1 + $0xd8] sm:$0xff]
  %v82 = vld [vmem:[%s1 + $0xe0] sm:$0xff]
  %v83 = vld [vmem:[%s1 + $0xe8] sm:$0xff]
  %v84 = vld [vmem:[%s1 + $0xf0] sm:$0xff]
  %v85 = vld [vmem:[%s1 + $0xf8] sm:$0xff]
  %v86 = vld [vmem:[%s2] sm:$0x1]
  %v88 = vlaneseq
  %v89 = vshrl.u32 %v88, 7
  %v90 = vsub.s32 0, %v89
  %v91 = vrot.slane %v86, %v90
  %93 = vmatprep.subr.mxu0 0.0
  %94 = vmatpush1.msra.mxu0 %v54
  %95 = vmatprep.subr.mxu0 0.0
  %96 = vmatpush1.msra.mxu0 %v55
  %97 = vmatprep.subr.mxu0 0.0
  %98 = vmatpush1.msra.mxu0 %v56
  %99 = vmatprep.subr.mxu0 0.0
  %100 = vmatpush1.msra.mxu0 %v57
  %101 = vmatprep.subr.mxu0 0.0
  %102 = vmatpush1.msra.mxu0 %v58
  %103 = vmatprep.subr.mxu0 0.0
  %104 = vmatpush1.msra.mxu0 %v59
  %105 = vmatprep.subr.mxu0 0.0
  %106 = vmatpush1.msra.mxu0 %v60
  %107 = vmatprep.subr.mxu0 0.0
  %108 = vmatpush1.msra.mxu0 %v61
  %109 = vmatprep.subr.mxu0 0.0
  %110 = vmatpush1.msra.mxu0 %v62
  %111 = vmatprep.subr.mxu0 0.0
  %112 = vmatpush1.msra.mxu0 %v63
  %113 = vmatprep.subr.mxu0 0.0
  %114 = vmatpush1.msra.mxu0 %v64
  %115 = vmatprep.subr.mxu0 0.0
  %116 = vmatpush1.msra.mxu0 %v65
  %117 = vmatprep.subr.mxu0 0.0
  %118 = vmatpush1.msra.mxu0 %v66
  %119 = vmatprep.subr.mxu0 0.0
  %120 = vmatpush1.msra.mxu0 %v67
  %121 = vmatprep.subr.mxu0 0.0
  %122 = vmatpush1.msra.mxu0 %v68
  %123 = vmatprep.subr.mxu0 0.0
  %124 = vmatpush1.msra.mxu0 %v69
  %125 = vmatprep.subr.mxu0 0.0
  %126 = vmatpush1.msra.mxu0 %v70
  %127 = vmatprep.subr.mxu0 0.0
  %128 = vmatpush1.msra.mxu0 %v71
  %129 = vmatprep.subr.mxu0 0.0
  %130 = vmatpush1.msra.mxu0 %v72
  %131 = vmatprep.subr.mxu0 0.0
  %132 = vmatpush1.msra.mxu0 %v73
  %133 = vmatprep.subr.mxu0 0.0
  %134 = vmatpush1.msra.mxu0 %v74
  %135 = vmatprep.subr.mxu0 0.0
  %136 = vmatpush1.msra.mxu0 %v75
  %137 = vmatprep.subr.mxu0 0.0
  %138 = vmatpush1.msra.mxu0 %v76
  %139 = vmatprep.subr.mxu0 0.0
  %140 = vmatpush1.msra.mxu0 %v77
  %141 = vmatprep.subr.mxu0 0.0
  %142 = vmatpush1.msra.mxu0 %v78
  %143 = vmatprep.subr.mxu0 0.0
  %144 = vmatpush1.msra.mxu0 %v79
  %145 = vmatprep.subr.mxu0 0.0
  %146 = vmatpush1.msra.mxu0 %v80
  %147 = vmatprep.subr.mxu0 0.0
  %148 = vmatpush1.msra.mxu0 %v81
  %149 = vmatprep.subr.mxu0 0.0
  %150 = vmatpush1.msra.mxu0 %v82
  %151 = vmatprep.subr.mxu0 0.0
  %152 = vmatpush1.msra.mxu0 %v83
  %153 = vmatprep.subr.mxu0 0.0
  %154 = vmatpush1.msra.mxu0 %v84
  %155 = vmatprep.subr.mxu0 0.0
  %156 = vmatpush1.msra.mxu0 %v85
  %157 = vmatprep.mubr.f32.mxu0 %v27
  %158 = vmatmul.mubr.f32.gmra.mrb[0].mxu0 %v26
  %v159 = vpop.f32.mrb[0].mxu0
  %v160 = vadd.f32 %v91, %v159
  %v161 = vpop.f32.mrb[0].mxu0
  %162 = vmatprep.mubr.f32.mxu0 %v29
  %163 = vmatmul.mubr.f32.gmra.mrb[0].mxu0 %v28
  %v164 = vpop.f32.mrb[0].mxu0
  %v165 = vadd.f32 %v91, %v164
  %v166 = vpop.f32.mrb[0].mxu0
  %167 = vmatprep.mubr.f32.mxu0 %v31
  %168 = vmatmul.mubr.f32.gmra.mrb[0].mxu0 %v30
  %v169 = vpop.f32.mrb[0].mxu0
  %v170 = vadd.f32 %v91, %v169
  %v171 = vpop.f32.mrb[0].mxu0
  %172 = vmatprep.mubr.f32.mxu0 %v33
  %173 = vmatmul.mubr.f32.gmra.mrb[0].mxu0 %v32
  %v174 = vpop.f32.mrb[0].mxu0
  %v175 = vadd.f32 %v91, %v174
  %v176 = vpop.f32.mrb[0].mxu0
  %177 = vmatprep.mubr.f32.mxu0 %v35
  %178 = vmatmul.mubr.f32.gmra.mrb[0].mxu0 %v34
  %v179 = vpop.f32.mrb[0].mxu0
  %v180 = vadd.f32 %v91, %v179
  %v181 = vpop.f32.mrb[0].mxu0
  %182 = vmatprep.mubr.f32.mxu0 %v37
  %183 = vmatmul.mubr.f32.gmra.mrb[0].mxu0 %v36
  %v184 = vpop.f32.mrb[0].mxu0
  %v185 = vadd.f32 %v91, %v184
  %v186 = vpop.f32.mrb[0].mxu0
  %187 = vmatprep.mubr.f32.mxu0 %v39
  %188 = vmatmul.mubr.f32.gmra.mrb[0].mxu0 %v38
  %v189 = vpop.f32.mrb[0].mxu0
  %v190 = vadd.f32 %v91, %v189
  %v191 = vpop.f32.mrb[0].mxu0
  %192 = vmatprep.mubr.f32.mxu0 %v41
  %193 = vmatmul.mubr.f32.gmra.mrb[0].mxu0 %v40
  %v194 = vpop.f32.mrb[0].mxu0
  %v195 = vadd.f32 %v91, %v194
  %v196 = vpop.f32.mrb[0].mxu0
  %197 = vmatprep.mubr.f32.mxu0 %v43
  %198 = vmatmul.mubr.f32.gmra.mrb[0].mxu0 %v42
  %v199 = vpop.f32.mrb[0].mxu0
  %v200 = vadd.f32 %v91, %v199
  %v201 = vpop.f32.mrb[0].mxu0
  %202 = vmatprep.mubr.f32.mxu0 %v45
  %203 = vmatmul.mubr.f32.gmra.mrb[0].mxu0 %v44
  %v204 = vpop.f32.mrb[0].mxu0
  %v205 = vadd.f32 %v91, %v204
  %v206 = vpop.f32.mrb[0].mxu0
  %207 = vmatprep.mubr.f32.mxu0 %v47
  %208 = vmatmul.mubr.f32.gmra.mrb[0].mxu0 %v46
  %v209 = vpop.f32.mrb[0].mxu0
  %v210 = vadd.f32 %v91, %v209
  %v211 = vpop.f32.mrb[0].mxu0
  %212 = vmatprep.mubr.f32.mxu0 %v49
  %213 = vmatmul.mubr.f32.gmra.mrb[0].mxu0 %v48
  %v214 = vpop.f32.mrb[0].mxu0
  %v215 = vadd.f32 %v91, %v214
  %v216 = vpop.f32.mrb[0].mxu0
  %217 = vmatprep.mubr.f32.mxu0 %v51
  %218 = vmatmul.mubr.f32.gmra.mrb[0].mxu0 %v50
  %v219 = vpop.f32.mrb[0].mxu0
  %v220 = vadd.f32 %v91, %v219
  %v221 = vpop.f32.mrb[0].mxu0
  %222 = vmatprep.mubr.f32.mxu0 %v53
  %223 = vmatmul.mubr.f32.gmra.mrb[0].mxu0 %v52
  %v224 = vpop.f32.mrb[0].mxu0
  %v225 = vadd.f32 %v91, %v224
  %v226 = vpop.f32.mrb[0].mxu0
  %227 = vdwg.mxu0
  %vm228 = vcmp.ge.f32.partialorder %v160, 0.0
  %vm229 = vcmp.ge.f32.partialorder %v165, 0.0
  %vm230 = vcmp.ge.f32.partialorder %v170, 0.0
  %vm231 = vcmp.ge.f32.partialorder %v175, 0.0
  %vm232 = vcmp.ge.f32.partialorder %v180, 0.0
  %vm233 = vcmp.ge.f32.partialorder %v185, 0.0
  %vm234 = vcmp.ge.f32.partialorder %v190, 0.0
  %vm235 = vcmp.ge.f32.partialorder %v195, 0.0
  %vm236 = vcmp.ge.f32.partialorder %v200, 0.0
  %vm237 = vcmp.ge.f32.partialorder %v205, 0.0
  %vm238 = vcmp.ge.f32.partialorder %v210, 0.0
  %vm239 = vcmp.ge.f32.partialorder %v215, 0.0
  %vm240 = vcmp.ge.f32.partialorder %v220, 0.0
  %vm241 = vcmp.ge.f32.partialorder %v225, 0.0
  %v242 = vmul.f32 %v160, 0.01
  %v243 = vmul.f32 %v165, 0.01
  %v244 = vmul.f32 %v170, 0.01
  %v245 = vmul.f32 %v175, 0.01
  %v246 = vmul.f32 %v180, 0.01
  %v247 = vmul.f32 %v185, 0.01
  %v248 = vmul.f32 %v190, 0.01
  %v249 = vmul.f32 %v195, 0.01
  %v250 = vmul.f32 %v200, 0.01
  %v251 = vmul.f32 %v205, 0.01
  %v252 = vmul.f32 %v210, 0.01
  %v253 = vmul.f32 %v215, 0.01
  %v254 = vmul.f32 %v220, 0.01
  %v255 = vmul.f32 %v225, 0.01
  %v256 = vsel %vm228, %v160, %v242
  %v257 = vsel %vm229, %v165, %v243
  %v258 = vsel %vm230, %v170, %v244
  %v259 = vsel %vm231, %v175, %v245
  %v260 = vsel %vm232, %v180, %v246
  %v261 = vsel %vm233, %v185, %v247
  %v262 = vsel %vm234, %v190, %v248
  %v263 = vsel %vm235, %v195, %v249
  %v264 = vsel %vm236, %v200, %v250
  %v265 = vsel %vm237, %v205, %v251
  %v266 = vsel %vm238, %v210, %v252
  %v267 = vsel %vm239, %v215, %v253
  %v268 = vsel %vm240, %v220, %v254
  %v269 = vsel %vm241, %v225, %v255
  %v270 = vld [vmem:[%s3] sm:$0xff]
  %v271 = vld [vmem:[%s3 + $0x8] sm:$0xff]
  %v272 = vld [vmem:[%s3 + $0x10] sm:$0xff]
  %v273 = vld [vmem:[%s3 + $0x18] sm:$0xff]
  %v274 = vld [vmem:[%s3 + $0x20] sm:$0xff]
  %v275 = vld [vmem:[%s3 + $0x28] sm:$0xff]
  %v276 = vld [vmem:[%s3 + $0x30] sm:$0xff]
  %v277 = vld [vmem:[%s3 + $0x38] sm:$0xff]
  %v278 = vld [vmem:[%s3 + $0x40] sm:$0xff]
  %v279 = vld [vmem:[%s3 + $0x48] sm:$0xff]
  %v280 = vld [vmem:[%s3 + $0x50] sm:$0xff]
  %v281 = vld [vmem:[%s3 + $0x58] sm:$0xff]
  %v282 = vld [vmem:[%s3 + $0x60] sm:$0xff]
  %v283 = vld [vmem:[%s3 + $0x68] sm:$0xff]
  %v284 = vld [vmem:[%s3 + $0x70] sm:$0xff]
  %v285 = vld [vmem:[%s3 + $0x78] sm:$0xff]
  %v286 = vld [vmem:[%s4] sm:$0x1]
  %v288 = vlaneseq
  %v289 = vshrl.u32 %v288, 7
  %v290 = vsub.s32 0, %v289
  %v291 = vrot.slane %v286, %v290
  %293 = vmatprep.subr.mxu0 0.0
  %294 = vmatpush1.msra.mxu0 %v270
  %295 = vmatprep.subr.mxu0 0.0
  %296 = vmatpush1.msra.mxu0 %v271
  %297 = vmatprep.subr.mxu0 0.0
  %298 = vmatpush1.msra.mxu0 %v272
  %299 = vmatprep.subr.mxu0 0.0
  %300 = vmatpush1.msra.mxu0 %v273
  %301 = vmatprep.subr.mxu0 0.0
  %302 = vmatpush1.msra.mxu0 %v274
  %303 = vmatprep.subr.mxu0 0.0
  %304 = vmatpush1.msra.mxu0 %v275
  %305 = vmatprep.subr.mxu0 0.0
  %306 = vmatpush1.msra.mxu0 %v276
  %307 = vmatprep.subr.mxu0 0.0
  %308 = vmatpush1.msra.mxu0 %v277
  %309 = vmatprep.subr.mxu0 0.0
  %310 = vmatpush1.msra.mxu0 %v278
  %311 = vmatprep.subr.mxu0 0.0
  %312 = vmatpush1.msra.mxu0 %v279
  %313 = vmatprep.subr.mxu0 0.0
  %314 = vmatpush1.msra.mxu0 %v280
  %315 = vmatprep.subr.mxu0 0.0
  %316 = vmatpush1.msra.mxu0 %v281
  %317 = vmatprep.subr.mxu0 0.0
  %318 = vmatpush1.msra.mxu0 %v282
  %319 = vmatprep.subr.mxu0 0.0
  %320 = vmatpush1.msra.mxu0 %v283
  %321 = vmatprep.subr.mxu0 0.0
  %322 = vmatpush1.msra.mxu0 %v284
  %323 = vmatprep.subr.mxu0 0.0
  %324 = vmatpush1.msra.mxu0 %v285
  %325 = vmatprep.subr.mxu0 0.0
  %326 = vmatpush1.msra.mxu0 0.0
  %327 = vmatprep.subr.mxu0 0.0
  %328 = vmatpush1.msra.mxu0 0.0
  %329 = vmatprep.subr.mxu0 0.0
  %330 = vmatpush1.msra.mxu0 0.0
  %331 = vmatprep.subr.mxu0 0.0
  %332 = vmatpush1.msra.mxu0 0.0
  %333 = vmatprep.subr.mxu0 0.0
  %334 = vmatpush1.msra.mxu0 0.0
  %335 = vmatprep.subr.mxu0 0.0
  %336 = vmatpush1.msra.mxu0 0.0
  %337 = vmatprep.subr.mxu0 0.0
  %338 = vmatpush1.msra.mxu0 0.0
  %339 = vmatprep.subr.mxu0 0.0
  %340 = vmatpush1.msra.mxu0 0.0
  %341 = vmatprep.subr.mxu0 0.0
  %342 = vmatpush1.msra.mxu0 0.0
  %343 = vmatprep.subr.mxu0 0.0
  %344 = vmatpush1.msra.mxu0 0.0
  %345 = vmatprep.subr.mxu0 0.0
  %346 = vmatpush1.msra.mxu0 0.0
  %347 = vmatprep.subr.mxu0 0.0
  %348 = vmatpush1.msra.mxu0 0.0
  %349 = vmatprep.subr.mxu0 0.0
  %350 = vmatpush1.msra.mxu0 0.0
  %351 = vmatprep.subr.mxu0 0.0
  %352 = vmatpush1.msra.mxu0 0.0
  %353 = vmatprep.subr.mxu0 0.0
  %354 = vmatpush1.msra.mxu0 0.0
  %355 = vmatprep.subr.mxu0 0.0
  %356 = vmatpush1.msra.mxu0 0.0
  %357 = vmatprep.mubr.f32.mxu0 0.0
  %358 = vmatmul.mubr.f32.gmra.mrb[0].mxu0 %v256
  %v359 = vpop.f32.mrb[0].mxu0
  %v360 = vadd.f32 %v291, %v359
  %v361 = vpop.f32.mrb[0].mxu0
  %362 = vmatprep.mubr.f32.mxu0 0.0
  %363 = vmatmul.mubr.f32.gmra.mrb[0].mxu0 %v257
  %v364 = vpop.f32.mrb[0].mxu0
  %v365 = vadd.f32 %v291, %v364
  %v366 = vpop.f32.mrb[0].mxu0
  %367 = vmatprep.mubr.f32.mxu0 0.0
  %368 = vmatmul.mubr.f32.gmra.mrb[0].mxu0 %v258
  %v369 = vpop.f32.mrb[0].mxu0
  %v370 = vadd.f32 %v291, %v369
  %v371 = vpop.f32.mrb[0].mxu0
  %372 = vmatprep.mubr.f32.mxu0 0.0
  %373 = vmatmul.mubr.f32.gmra.mrb[0].mxu0 %v259
  %v374 = vpop.f32.mrb[0].mxu0
  %v375 = vadd.f32 %v291, %v374
  %v376 = vpop.f32.mrb[0].mxu0
  %377 = vmatprep.mubr.f32.mxu0 0.0
  %378 = vmatmul.mubr.f32.gmra.mrb[0].mxu0 %v260
  %v379 = vpop.f32.mrb[0].mxu0
  %v380 = vadd.f32 %v291, %v379
  %v381 = vpop.f32.mrb[0].mxu0
  %382 = vmatprep.mubr.f32.mxu0 0.0
  %383 = vmatmul.mubr.f32.gmra.mrb[0].mxu0 %v261
  %v384 = vpop.f32.mrb[0].mxu0
  %v385 = vadd.f32 %v291, %v384
  %v386 = vpop.f32.mrb[0].mxu0
  %387 = vmatprep.mubr.f32.mxu0 0.0
  %388 = vmatmul.mubr.f32.gmra.mrb[0].mxu0 %v262
  %v389 = vpop.f32.mrb[0].mxu0
  %v390 = vadd.f32 %v291, %v389
  %v391 = vpop.f32.mrb[0].mxu0
  %392 = vmatprep.mubr.f32.mxu0 0.0
  %393 = vmatmul.mubr.f32.gmra.mrb[0].mxu0 %v263
  %v394 = vpop.f32.mrb[0].mxu0
  %v395 = vadd.f32 %v291, %v394
  %v396 = vpop.f32.mrb[0].mxu0
  %397 = vmatprep.mubr.f32.mxu0 0.0
  %398 = vmatmul.mubr.f32.gmra.mrb[0].mxu0 %v264
  %v399 = vpop.f32.mrb[0].mxu0
  %v400 = vadd.f32 %v291, %v399
  %v401 = vpop.f32.mrb[0].mxu0
  %402 = vmatprep.mubr.f32.mxu0 0.0
  %403 = vmatmul.mubr.f32.gmra.mrb[0].mxu0 %v265
  %v404 = vpop.f32.mrb[0].mxu0
  %v405 = vadd.f32 %v291, %v404
  %v406 = vpop.f32.mrb[0].mxu0
  %407 = vmatprep.mubr.f32.mxu0 0.0
  %408 = vmatmul.mubr.f32.gmra.mrb[0].mxu0 %v266
  %v409 = vpop.f32.mrb[0].mxu0
  %v410 = vadd.f32 %v291, %v409
  %v411 = vpop.f32.mrb[0].mxu0
  %412 = vmatprep.mubr.f32.mxu0 0.0
  %413 = vmatmul.mubr.f32.gmra.mrb[0].mxu0 %v267
  %v414 = vpop.f32.mrb[0].mxu0
  %v415 = vadd.f32 %v291, %v414
  %v416 = vpop.f32.mrb[0].mxu0
  %417 = vmatprep.mubr.f32.mxu0 0.0
  %418 = vmatmul.mubr.f32.gmra.mrb[0].mxu0 %v268
  %v419 = vpop.f32.mrb[0].mxu0
  %v420 = vadd.f32 %v291, %v419
  %v421 = vpop.f32.mrb[0].mxu0
  %422 = vmatprep.mubr.f32.mxu0 0.0
  %423 = vmatmul.mubr.f32.gmra.mrb[0].mxu0 %v269
  %v424 = vpop.f32.mrb[0].mxu0
  %v425 = vadd.f32 %v291, %v424
  %v426 = vpop.f32.mrb[0].mxu0
  %427 = vdwg.mxu0
  %vm428 = vcmp.ge.f32.partialorder %v360, 0.0
  %vm429 = vcmp.ge.f32.partialorder %v365, 0.0
  %vm430 = vcmp.ge.f32.partialorder %v370, 0.0
  %vm431 = vcmp.ge.f32.partialorder %v375, 0.0
  %vm432 = vcmp.ge.f32.partialorder %v380, 0.0
  %vm433 = vcmp.ge.f32.partialorder %v385, 0.0
  %vm434 = vcmp.ge.f32.partialorder %v390, 0.0
  %vm435 = vcmp.ge.f32.partialorder %v395, 0.0
  %vm436 = vcmp.ge.f32.partialorder %v400, 0.0
  %vm437 = vcmp.ge.f32.partialorder %v405, 0.0
  %vm438 = vcmp.ge.f32.partialorder %v410, 0.0
  %vm439 = vcmp.ge.f32.partialorder %v415, 0.0
  %vm440 = vcmp.ge.f32.partialorder %v420, 0.0
  %vm441 = vcmp.ge.f32.partialorder %v425, 0.0
  %v442 = vmul.f32 %v360, 0.01
  %v443 = vmul.f32 %v365, 0.01
  %v444 = vmul.f32 %v370, 0.01
  %v445 = vmul.f32 %v375, 0.01
  %v446 = vmul.f32 %v380, 0.01
  %v447 = vmul.f32 %v385, 0.01
  %v448 = vmul.f32 %v390, 0.01
  %v449 = vmul.f32 %v395, 0.01
  %v450 = vmul.f32 %v400, 0.01
  %v451 = vmul.f32 %v405, 0.01
  %v452 = vmul.f32 %v410, 0.01
  %v453 = vmul.f32 %v415, 0.01
  %v454 = vmul.f32 %v420, 0.01
  %v455 = vmul.f32 %v425, 0.01
  %v456 = vsel %vm428, %v360, %v442
  %v457 = vsel %vm429, %v365, %v443
  %v458 = vsel %vm430, %v370, %v444
  %v459 = vsel %vm431, %v375, %v445
  %v460 = vsel %vm432, %v380, %v446
  %v461 = vsel %vm433, %v385, %v447
  %v462 = vsel %vm434, %v390, %v448
  %v463 = vsel %vm435, %v395, %v449
  %v464 = vsel %vm436, %v400, %v450
  %v465 = vsel %vm437, %v405, %v451
  %v466 = vsel %vm438, %v410, %v452
  %v467 = vsel %vm439, %v415, %v453
  %v468 = vsel %vm440, %v420, %v454
  %v469 = vsel %vm441, %v425, %v455
  %v470 = vld [vmem:[%s5] sm:$0xff]
  %v471 = vld [vmem:[%s5 + $0x8] sm:$0xff]
  %v472 = vld [vmem:[%s5 + $0x10] sm:$0xff]
  %v473 = vld [vmem:[%s5 + $0x18] sm:$0xff]
  %v474 = vld [vmem:[%s5 + $0x20] sm:$0xff]
  %v475 = vld [vmem:[%s5 + $0x28] sm:$0xff]
  %v476 = vld [vmem:[%s5 + $0x30] sm:$0xff]
  %v477 = vld [vmem:[%s5 + $0x38] sm:$0xff]
  %v478 = vld [vmem:[%s5 + $0x40] sm:$0xff]
  %v479 = vld [vmem:[%s5 + $0x48] sm:$0xff]
  %v480 = vld [vmem:[%s5 + $0x50] sm:$0xff]
  %v481 = vld [vmem:[%s5 + $0x58] sm:$0xff]
  %v482 = vld [vmem:[%s5 + $0x60] sm:$0xff]
  %v483 = vld [vmem:[%s5 + $0x68] sm:$0xff]
  %v484 = vld [vmem:[%s5 + $0x70] sm:$0xff]
  %v485 = vld [vmem:[%s5 + $0x78] sm:$0xff]
  %v486 = vld [vmem:[%s6] sm:$0x1]
  %v488 = vlaneseq
  %v489 = vshrl.u32 %v488, 7
  %v490 = vsub.s32 0, %v489
  %v491 = vrot.slane %v486, %v490
  %493 = vmatprep.subr.mxu0 0.0
  %494 = vmatpush1.msra.mxu0 %v470
  %495 = vmatprep.subr.mxu0 0.0
  %496 = vmatpush1.msra.mxu0 %v471
  %497 = vmatprep.subr.mxu0 0.0
  %498 = vmatpush1.msra.mxu0 %v472
  %499 = vmatprep.subr.mxu0 0.0
  %500 = vmatpush1.msra.mxu0 %v473
  %501 = vmatprep.subr.mxu0 0.0
  %502 = vmatpush1.msra.mxu0 %v474
  %503 = vmatprep.subr.mxu0 0.0
  %504 = vmatpush1.msra.mxu0 %v475
  %505 = vmatprep.subr.mxu0 0.0
  %506 = vmatpush1.msra.mxu0 %v476
  %507 = vmatprep.subr.mxu0 0.0
  %508 = vmatpush1.msra.mxu0 %v477
  %509 = vmatprep.subr.mxu0 0.0
  %510 = vmatpush1.msra.mxu0 %v478
  %511 = vmatprep.subr.mxu0 0.0
  %512 = vmatpush1.msra.mxu0 %v479
  %513 = vmatprep.subr.mxu0 0.0
  %514 = vmatpush1.msra.mxu0 %v480
  %515 = vmatprep.subr.mxu0 0.0
  %516 = vmatpush1.msra.mxu0 %v481
  %517 = vmatprep.subr.mxu0 0.0
  %518 = vmatpush1.msra.mxu0 %v482
  %519 = vmatprep.subr.mxu0 0.0
  %520 = vmatpush1.msra.mxu0 %v483
  %521 = vmatprep.subr.mxu0 0.0
  %522 = vmatpush1.msra.mxu0 %v484
  %523 = vmatprep.subr.mxu0 0.0
  %524 = vmatpush1.msra.mxu0 %v485
  %525 = vmatprep.subr.mxu0 0.0
  %526 = vmatpush1.msra.mxu0 0.0
  %527 = vmatprep.subr.mxu0 0.0
  %528 = vmatpush1.msra.mxu0 0.0
  %529 = vmatprep.subr.mxu0 0.0
  %530 = vmatpush1.msra.mxu0 0.0
  %531 = vmatprep.subr.mxu0 0.0
  %532 = vmatpush1.msra.mxu0 0.0
  %533 = vmatprep.subr.mxu0 0.0
  %534 = vmatpush1.msra.mxu0 0.0
  %535 = vmatprep.subr.mxu0 0.0
  %536 = vmatpush1.msra.mxu0 0.0
  %537 = vmatprep.subr.mxu0 0.0
  %538 = vmatpush1.msra.mxu0 0.0
  %539 = vmatprep.subr.mxu0 0.0
  %540 = vmatpush1.msra.mxu0 0.0
  %541 = vmatprep.subr.mxu0 0.0
  %542 = vmatpush1.msra.mxu0 0.0
  %543 = vmatprep.subr.mxu0 0.0
  %544 = vmatpush1.msra.mxu0 0.0
  %545 = vmatprep.subr.mxu0 0.0
  %546 = vmatpush1.msra.mxu0 0.0
  %547 = vmatprep.subr.mxu0 0.0
  %548 = vmatpush1.msra.mxu0 0.0
  %549 = vmatprep.subr.mxu0 0.0
  %550 = vmatpush1.msra.mxu0 0.0
  %551 = vmatprep.subr.mxu0 0.0
  %552 = vmatpush1.msra.mxu0 0.0
  %553 = vmatprep.subr.mxu0 0.0
  %554 = vmatpush1.msra.mxu0 0.0
  %555 = vmatprep.subr.mxu0 0.0
  %556 = vmatpush1.msra.mxu0 0.0
  %557 = vmatprep.mubr.f32.mxu0 0.0
  %558 = vmatmul.mubr.f32.gmra.mrb[0].mxu0 %v456
  %v559 = vpop.f32.mrb[0].mxu0
  %v560 = vadd.f32 %v491, %v559
  %v561 = vpop.f32.mrb[0].mxu0
  %562 = vmatprep.mubr.f32.mxu0 0.0
  %563 = vmatmul.mubr.f32.gmra.mrb[0].mxu0 %v457
  %v564 = vpop.f32.mrb[0].mxu0
  %v565 = vadd.f32 %v491, %v564
  %v566 = vpop.f32.mrb[0].mxu0
  %567 = vmatprep.mubr.f32.mxu0 0.0
  %568 = vmatmul.mubr.f32.gmra.mrb[0].mxu0 %v458
  %v569 = vpop.f32.mrb[0].mxu0
  %v570 = vadd.f32 %v491, %v569
  %v571 = vpop.f32.mrb[0].mxu0
  %572 = vmatprep.mubr.f32.mxu0 0.0
  %573 = vmatmul.mubr.f32.gmra.mrb[0].mxu0 %v459
  %v574 = vpop.f32.mrb[0].mxu0
  %v575 = vadd.f32 %v491, %v574
  %v576 = vpop.f32.mrb[0].mxu0
  %577 = vmatprep.mubr.f32.mxu0 0.0
  %578 = vmatmul.mubr.f32.gmra.mrb[0].mxu0 %v460
  %v579 = vpop.f32.mrb[0].mxu0
  %v580 = vadd.f32 %v491, %v579
  %v581 = vpop.f32.mrb[0].mxu0
  %582 = vmatprep.mubr.f32.mxu0 0.0
  %583 = vmatmul.mubr.f32.gmra.mrb[0].mxu0 %v461
  %v584 = vpop.f32.mrb[0].mxu0
  %v585 = vadd.f32 %v491, %v584
  %v586 = vpop.f32.mrb[0].mxu0
  %587 = vmatprep.mubr.f32.mxu0 0.0
  %588 = vmatmul.mubr.f32.gmra.mrb[0].mxu0 %v462
  %v589 = vpop.f32.mrb[0].mxu0
  %v590 = vadd.f32 %v491, %v589
  %v591 = vpop.f32.mrb[0].mxu0
  %592 = vmatprep.mubr.f32.mxu0 0.0
  %593 = vmatmul.mubr.f32.gmra.mrb[0].mxu0 %v463
  %v594 = vpop.f32.mrb[0].mxu0
  %v595 = vadd.f32 %v491, %v594
  %v596 = vpop.f32.mrb[0].mxu0
  %597 = vmatprep.mubr.f32.mxu0 0.0
  %598 = vmatmul.mubr.f32.gmra.mrb[0].mxu0 %v464
  %v599 = vpop.f32.mrb[0].mxu0
  %v600 = vadd.f32 %v491, %v599
  %v601 = vpop.f32.mrb[0].mxu0
  %602 = vmatprep.mubr.f32.mxu0 0.0
  %603 = vmatmul.mubr.f32.gmra.mrb[0].mxu0 %v465
  %v604 = vpop.f32.mrb[0].mxu0
  %v605 = vadd.f32 %v491, %v604
  %v606 = vpop.f32.mrb[0].mxu0
  %607 = vmatprep.mubr.f32.mxu0 0.0
  %608 = vmatmul.mubr.f32.gmra.mrb[0].mxu0 %v466
  %v609 = vpop.f32.mrb[0].mxu0
  %v610 = vadd.f32 %v491, %v609
  %v611 = vpop.f32.mrb[0].mxu0
  %612 = vmatprep.mubr.f32.mxu0 0.0
  %613 = vmatmul.mubr.f32.gmra.mrb[0].mxu0 %v467
  %v614 = vpop.f32.mrb[0].mxu0
  %v615 = vadd.f32 %v491, %v614
  %v616 = vpop.f32.mrb[0].mxu0
  %617 = vmatprep.mubr.f32.mxu0 0.0
  %618 = vmatmul.mubr.f32.gmra.mrb[0].mxu0 %v468
  %v619 = vpop.f32.mrb[0].mxu0
  %v620 = vadd.f32 %v491, %v619
  %v621 = vpop.f32.mrb[0].mxu0
  %622 = vmatprep.mubr.f32.mxu0 0.0
  %623 = vmatmul.mubr.f32.gmra.mrb[0].mxu0 %v469
  %v624 = vpop.f32.mrb[0].mxu0
  %v625 = vadd.f32 %v491, %v624
  %v626 = vpop.f32.mrb[0].mxu0
  %627 = vdwg.mxu0
  %628 = vst [vmem:[%s7] sm:$0xff] %v560
  %629 = vst [vmem:[%s7 + $0x8] sm:$0xff] %v565
  %630 = vst [vmem:[%s7 + $0x10] sm:$0xff] %v570
  %631 = vst [vmem:[%s7 + $0x18] sm:$0xff] %v575
  %632 = vst [vmem:[%s7 + $0x20] sm:$0xff] %v580
  %633 = vst [vmem:[%s7 + $0x28] sm:$0xff] %v585
  %634 = vst [vmem:[%s7 + $0x30] sm:$0xff] %v590
  %635 = vst [vmem:[%s7 + $0x38] sm:$0xff] %v595
  %636 = vst [vmem:[%s7 + $0x40] sm:$0xff] %v600
  %637 = vst [vmem:[%s7 + $0x48] sm:$0xff] %v605
  %638 = vst [vmem:[%s7 + $0x50] sm:$0xff] %v610
  %639 = vst [vmem:[%s7 + $0x58] sm:$0xff] %v615
  %640 = vst [vmem:[%s7 + $0x60] sm:$0xff] %v620
  %641 = vst [vmem:[%s7 + $0x68] sm:$0xff] %v625
  // Predicated region
  $region30: #{ffnn_forward.1} parent=0 // pred_check
    _
  $region31: #{ffnn_forward.1} parent=0 // pred_check_branch
    %643 = sbr.rel (0) target = $region33
  $region32: #{ffnn_forward.1} parent=0 // pred_region
    _
  $region33: #{ffnn_forward.1} parent=0 // pred_fallthru
    _
  // Predicated region
  $region34: #{ffnn_forward.1} parent=0 // pred_check
    _
  $region35: #{ffnn_forward.1} parent=0 // pred_check_branch
    %645 = sbr.rel (0) target = $region37
  $region36: #{ffnn_forward.1} parent=0 // pred_region
    _
  $region37: #{ffnn_forward.1} parent=0 // pred_fallthru
    _

</llo_original>
